<compile_context>
chip_gen: v7x
topology: tpu7x:2x2x1
jax: 0.10.0
libtpu: 0.0.40
codegen_flags: <defaults>
</compile_context>

<pallas_src>
import functools

import jax
import jax.numpy as jnp
from jax import lax
from jax.experimental import pallas as pl
from jax.experimental.pallas import tpu as pltpu


def _round_up(x, m):
    return ((x + m - 1) // m) * m


# ---------------------------------------------------------------------------
# Pallas kernel: fused twin-critic forward for one batch tile
# ---------------------------------------------------------------------------
def _fused_twin_critic_kernel(n_hidden, num_species,
                              state_ref, action_ref, ids_ref,
                              ws_ref, wa_ref, wsp_ref, bin_ref,
                              wh_ref, bh_ref, wout_ref, bout_ref,
                              out_ref):
    # per-tile shapes (Hp = hidden padded to a multiple of 128):
    #   state_ref  [tb, Ds]      ws_ref  [2, Ds, Hp]
    #   action_ref [tb, Da]      wa_ref  [2, Da, Hp]
    #   ids_ref    [tb, 1] i32   wsp_ref [2, S,  Hp]
    #                            bin_ref [2, 1,  Hp]
    #   wh_ref   [2, n_hidden, Hp, Hp]
    #   bh_ref   [2, n_hidden, 1,  Hp]
    #   wout_ref [2, 1, Hp]      bout_ref [2, 1, 1]
    #   out_ref  [tb, 2]
    st = state_ref[...]
    ac = action_ref[...]
    ids = ids_ref[...]                                  # [tb, 1] int32
    tb = st.shape[0]

    # one-hot built in-kernel (VPU iota+compare) -> no XLA one_hot/concat ops
    onehot = (lax.broadcasted_iota(jnp.int32, (tb, num_species), 1)
              == ids).astype(st.dtype)                  # [tb, S]

    for c in range(2):                                  # twin critics, unrolled
        # input layer: split matmuls replace concat(state, action, onehot) @ W_in
        h = jnp.dot(st, ws_ref[c], preferred_element_type=jnp.float32)
        h = h + jnp.dot(ac, wa_ref[c], preferred_element_type=jnp.float32)
        h = h + jnp.dot(onehot, wsp_ref[c], preferred_element_type=jnp.float32)
        h = jnp.maximum(h + bin_ref[c], 0.0)

        # hidden layers + ReLU (static unroll; n_hidden is a Python int)
        for i in range(n_hidden):
            h = jnp.dot(h, wh_ref[c, i], preferred_element_type=jnp.float32)
            h = jnp.maximum(h + bh_ref[c, i], 0.0)

        # output layer: VPU multiply + lane reduction instead of N=1 MXU matmul
        q = jnp.sum(h * wout_ref[c], axis=-1, keepdims=True) + bout_ref[c]
        out_ref[:, c:c + 1] = q.astype(out_ref.dtype)


# ---------------------------------------------------------------------------
# Parameter construction (per-critic, mimics the torch module's shapes)
# ---------------------------------------------------------------------------
def init_critic_params(key, in_dim, hidden_size, n_hidden):
    ks = jax.random.split(key, 6)
    scale = 0.1
    # weights stored [in, out] (transposed vs. torch nn.Linear)
    w_in = scale * jax.random.normal(ks[0], (in_dim, hidden_size), jnp.float32)
    b_in = scale * jax.random.normal(ks[1], (1, hidden_size), jnp.float32)
    w_h = scale * jax.random.normal(ks[2], (n_hidden, hidden_size, hidden_size),
                                    jnp.float32)
    b_h = scale * jax.random.normal(ks[3], (n_hidden, 1, hidden_size), jnp.float32)
    w_out = scale * jax.random.normal(ks[4], (hidden_size, 1), jnp.float32)
    b_out = scale * jax.random.normal(ks[5], (1, 1), jnp.float32)
    return (w_in, b_in, w_h, b_h, w_out, b_out)


# ---------------------------------------------------------------------------
# One-time parameter preparation: split W_in, pad hidden dim, stack critics
# ---------------------------------------------------------------------------
def prepare_fused_params(params_1, params_2, state_dim, action_dim, num_species):
    def prep(p):
        w_in, b_in, w_h, b_h, w_out, b_out = p
        H = w_in.shape[1]
        Hp = max(128, _round_up(H, 128))
        pad = Hp - H
        ws = jnp.pad(w_in[:state_dim], ((0, 0), (0, pad)))
        wa = jnp.pad(w_in[state_dim:state_dim + action_dim], ((0, 0), (0, pad)))
        wsp = jnp.pad(w_in[state_dim + action_dim:], ((0, 0), (0, pad)))
        b_in_p = jnp.pad(b_in, ((0, 0), (0, pad)))
        w_h_p = jnp.pad(w_h, ((0, 0), (0, pad), (0, pad)))
        b_h_p = jnp.pad(b_h, ((0, 0), (0, 0), (0, pad)))
        w_out_p = jnp.pad(w_out.reshape(1, H), ((0, 0), (0, pad)))   # [1, Hp]
        b_out_p = b_out.reshape(1, 1)
        return ws, wa, wsp, b_in_p, w_h_p, b_h_p, w_out_p, b_out_p

    p1 = prep(params_1)
    p2 = prep(params_2)
    # stack the two critics on a leading axis of 2
    return tuple(jnp.stack((a, b), axis=0) for a, b in zip(p1, p2))


# ---------------------------------------------------------------------------
# SpeciesCritic forward: one fused pallas_call -> (q1, q2)
# ---------------------------------------------------------------------------
def species_critic_forward(state, action, species_ids, fused_params,
                           n_hidden, num_species, batch_tile=256):
    B, Ds = state.shape
    Da = action.shape[1]
    ids = species_ids.reshape(B, 1).astype(jnp.int32)

    # batch tiling: single full-batch tile for small B, otherwise 256-row tiles
    tb = B if B <= batch_tile else batch_tile
    pad_b = (-B) % tb
    if pad_b:
        state = jnp.pad(state, ((0, pad_b), (0, 0)))
        action = jnp.pad(action, ((0, pad_b), (0, 0)))
        ids = jnp.pad(ids, ((0, pad_b), (0, 0)))
    Bp = B + pad_b
    nb = Bp // tb

    ws, wa, wsp, b_in, w_h, b_h, w_out, b_out = fused_params

    def batch_spec(feat):
        return pl.BlockSpec((tb, feat), lambda i: (i, 0))

    def weight_spec(arr):
        nd = arr.ndim
        # full-array block, constant index map -> stays resident across tiles
        return pl.BlockSpec(arr.shape, lambda i, _nd=nd: (0,) * _nd)

    kernel = functools.partial(_fused_twin_critic_kernel, n_hidden, num_species)

    out = pl.pallas_call(
        kernel,
        out_shape=jax.ShapeDtypeStruct((Bp, 2), jnp.float32),
        grid=(nb,),
        in_specs=[batch_spec(Ds), batch_spec(Da), batch_spec(1),
                  weight_spec(ws), weight_spec(wa), weight_spec(wsp),
                  weight_spec(b_in), weight_spec(w_h), weight_spec(b_h),
                  weight_spec(w_out), weight_spec(b_out)],
        out_specs=pl.BlockSpec((tb, 2), lambda i: (i, 0)),
        compiler_params=pltpu.CompilerParams(
            dimension_semantics=("parallel",)),
    )(state, action, ids, ws, wa, wsp, b_in, w_h, b_h, w_out, b_out)

    out = out[:B]
    return out[:, 0:1], out[:, 1:2]


# ---------------------------------------------------------------------------
# Pure-JAX reference (matches the torch module) for verification
# ---------------------------------------------------------------------------
def _reference_net(x, params, n_hidden):
    w_in, b_in, w_h, b_h, w_out, b_out = params
    h = jnp.maximum(x @ w_in + b_in, 0.0)
    for i in range(n_hidden):
        h = jnp.maximum(h @ w_h[i] + b_h[i], 0.0)
    return h @ w_out + b_out


if __name__ == "__main__":
    # small shapes consistent with the module's forward
    batch = 8
    state_dim = 12
    action_dim = 6
    hidden_size = 32
    n_hidden = 2
    num_species = 4
    in_dim = state_dim + action_dim + num_species

    key = jax.random.PRNGKey(0)
    k_state, k_action, k_species, k_p1, k_p2 = jax.random.split(key, 5)

    state = jax.random.normal(k_state, (batch, state_dim), jnp.float32)
    action = jax.random.normal(k_action, (batch, action_dim), jnp.float32)
    species_ids = jax.random.randint(k_species, (batch,), 0, num_species)

    params_1 = init_critic_params(k_p1, in_dim, hidden_size, n_hidden)
    params_2 = init_critic_params(k_p2, in_dim, hidden_size, n_hidden)

    # one-time prep: split / pad / stack both critics' params
    fused = prepare_fused_params(params_1, params_2,
                                 state_dim, action_dim, num_species)
    fused = jax.block_until_ready(fused)

    fwd = jax.jit(functools.partial(species_critic_forward,
                                    n_hidden=n_hidden,
                                    num_species=num_species))
    q1, q2 = fwd(state, action, species_ids, fused)
    jax.block_until_ready((q1, q2))

    # correctness check against a pure-JAX reference (unpadded params)
    species_one_hot = jax.nn.one_hot(species_ids, num_species, dtype=state.dtype)
    x = jnp.concatenate((state, action, species_one_hot), axis=-1)
    r1 = _reference_net(x, params_1, n_hidden)
    r2 = _reference_net(x, params_2, n_hidden)
    assert q1.shape == (batch, 1) and q2.shape == (batch, 1)
    assert jnp.allclose(q1, r1, atol=1e-5), "critic_1 mismatch"
    assert jnp.allclose(q2, r2, atol=1e-5), "critic_2 mismatch"

    print("KERNEL_OK")
</pallas_src>

<mosaic_0001>
module attributes {stable_mosaic.version = 11 : i64} {
  func.func @_fused_twin_critic_kernel(%arg0: i32, %arg1: memref<8x12xf32, #tpu.memory_space<vmem>>, %arg2: memref<8x6xf32, #tpu.memory_space<vmem>>, %arg3: memref<8x1xi32, #tpu.memory_space<vmem>>, %arg4: memref<2x12x128xf32, #tpu.memory_space<vmem>>, %arg5: memref<2x6x128xf32, #tpu.memory_space<vmem>>, %arg6: memref<2x4x128xf32, #tpu.memory_space<vmem>>, %arg7: memref<2x1x128xf32, #tpu.memory_space<vmem>>, %arg8: memref<2x2x128x128xf32, #tpu.memory_space<vmem>>, %arg9: memref<2x2x1x128xf32, #tpu.memory_space<vmem>>, %arg10: memref<2x1x128xf32, #tpu.memory_space<vmem>>, %arg11: memref<2x1x1xf32, #tpu.memory_space<vmem>>, %arg12: memref<8x2xf32, #tpu.memory_space<vmem>>) attributes {dimension_semantics = [#tpu.dimension_semantics<parallel>], iteration_bounds = array<i64: 1>, scalar_prefetch = 0 : i64, scratch_operands = 0 : i64, tpu.core_type = #tpu.core_type<tc>, window_params = [{transform_indices = @transform_0, window_bounds = array<i64: 8, 12>}, {transform_indices = @transform_1, window_bounds = array<i64: 8, 6>}, {transform_indices = @transform_2, window_bounds = array<i64: 8, 1>}, {pipeline_mode = #tpu.pipeline_mode<synchronous>, transform_indices = @transform_3, window_bounds = array<i64: 2, 12, 128>}, {pipeline_mode = #tpu.pipeline_mode<synchronous>, transform_indices = @transform_4, window_bounds = array<i64: 2, 6, 128>}, {pipeline_mode = #tpu.pipeline_mode<synchronous>, transform_indices = @transform_5, window_bounds = array<i64: 2, 4, 128>}, {pipeline_mode = #tpu.pipeline_mode<synchronous>, transform_indices = @transform_6, window_bounds = array<i64: 2, 1, 128>}, {pipeline_mode = #tpu.pipeline_mode<synchronous>, transform_indices = @transform_7, window_bounds = array<i64: 2, 2, 128, 128>}, {pipeline_mode = #tpu.pipeline_mode<synchronous>, transform_indices = @transform_8, window_bounds = array<i64: 2, 2, 1, 128>}, {pipeline_mode = #tpu.pipeline_mode<synchronous>, transform_indices = @transform_9, window_bounds = array<i64: 2, 1, 128>}, {pipeline_mode = #tpu.pipeline_mode<synchronous>, transform_indices = @transform_10, window_bounds = array<i64: 2, 1, 1>}, {transform_indices = @transform_11, window_bounds = array<i64: 8, 2>}]} {
    %c0 = arith.constant 0 : index
    %c0_0 = arith.constant 0 : index
    %0 = vector.load %arg1[%c0, %c0_0] : memref<8x12xf32, #tpu.memory_space<vmem>>, vector<8x12xf32>
    %c0_1 = arith.constant 0 : index
    %c0_2 = arith.constant 0 : index
    %1 = vector.load %arg2[%c0_1, %c0_2] : memref<8x6xf32, #tpu.memory_space<vmem>>, vector<8x6xf32>
    %c0_3 = arith.constant 0 : index
    %c0_4 = arith.constant 0 : index
    %2 = vector.load %arg3[%c0_3, %c0_4] : memref<8x1xi32, #tpu.memory_space<vmem>>, vector<8x1xi32>
    %3 = tpu.iota {dimensions = array<i32: 1>} : vector<8x4xi32>
    %4 = vector.broadcast %2 : vector<8x1xi32> to vector<8x4xi32>
    %5 = arith.cmpi eq, %3, %4 : vector<8x4xi32>
    %6 = arith.extui %5 : vector<8x4xi1> to vector<8x4xi32>
    %7 = arith.sitofp %6 : vector<8x4xi32> to vector<8x4xf32>
    %c0_5 = arith.constant 0 : index
    %c0_6 = arith.constant 0 : index
    %c0_7 = arith.constant 0 : index
    %8 = vector.load %arg4[%c0_5, %c0_6, %c0_7] : memref<2x12x128xf32, #tpu.memory_space<vmem>>, vector<1x12x128xf32>
    %9 = vector.shape_cast %8 : vector<1x12x128xf32> to vector<12x128xf32>
    %cst = arith.constant dense<0.000000e+00> : vector<8x128xf32>
    %10 = tpu.matmul %0, %9, %cst {dimension_numbers = #tpu.dot_dimension_numbers<[1], [0], [0], [1], [0, 0, 1, 1], [], []>} : vector<8x12xf32>, vector<12x128xf32>, vector<8x128xf32> -> vector<8x128xf32>
    %c0_8 = arith.constant 0 : index
    %c0_9 = arith.constant 0 : index
    %c0_10 = arith.constant 0 : index
    %11 = vector.load %arg5[%c0_8, %c0_9, %c0_10] : memref<2x6x128xf32, #tpu.memory_space<vmem>>, vector<1x6x128xf32>
    %12 = vector.shape_cast %11 : vector<1x6x128xf32> to vector<6x128xf32>
    %cst_11 = arith.constant dense<0.000000e+00> : vector<8x128xf32>
    %13 = tpu.matmul %1, %12, %cst_11 {dimension_numbers = #tpu.dot_dimension_numbers<[1], [0], [0], [1], [0, 0, 1, 1], [], []>} : vector<8x6xf32>, vector<6x128xf32>, vector<8x128xf32> -> vector<8x128xf32>
    %14 = arith.addf %10, %13 : vector<8x128xf32>
    %c0_12 = arith.constant 0 : index
    %c0_13 = arith.constant 0 : index
    %c0_14 = arith.constant 0 : index
    %15 = vector.load %arg6[%c0_12, %c0_13, %c0_14] : memref<2x4x128xf32, #tpu.memory_space<vmem>>, vector<1x4x128xf32>
    %16 = vector.shape_cast %15 : vector<1x4x128xf32> to vector<4x128xf32>
    %cst_15 = arith.constant dense<0.000000e+00> : vector<8x128xf32>
    %17 = tpu.matmul %7, %16, %cst_15 {dimension_numbers = #tpu.dot_dimension_numbers<[1], [0], [0], [1], [0, 0, 1, 1], [], []>} : vector<8x4xf32>, vector<4x128xf32>, vector<8x128xf32> -> vector<8x128xf32>
    %18 = arith.addf %14, %17 : vector<8x128xf32>
    %c0_16 = arith.constant 0 : index
    %c0_17 = arith.constant 0 : index
    %c0_18 = arith.constant 0 : index
    %19 = vector.load %arg7[%c0_16, %c0_17, %c0_18] : memref<2x1x128xf32, #tpu.memory_space<vmem>>, vector<1x1x128xf32>
    %20 = vector.shape_cast %19 : vector<1x1x128xf32> to vector<1x128xf32>
    %21 = vector.broadcast %20 : vector<1x128xf32> to vector<8x128xf32>
    %22 = arith.addf %18, %21 : vector<8x128xf32>
    %cst_19 = arith.constant 0.000000e+00 : f32
    %23 = vector.broadcast %cst_19 : f32 to vector<8x128xf32>
    %24 = arith.maximumf %22, %23 : vector<8x128xf32>
    %c0_20 = arith.constant 0 : index
    %c0_21 = arith.constant 0 : index
    %c0_22 = arith.constant 0 : index
    %c0_23 = arith.constant 0 : index
    %25 = vector.load %arg8[%c0_20, %c0_21, %c0_22, %c0_23] : memref<2x2x128x128xf32, #tpu.memory_space<vmem>>, vector<1x1x128x128xf32>
    %26 = vector.shape_cast %25 : vector<1x1x128x128xf32> to vector<128x128xf32>
    %cst_24 = arith.constant dense<0.000000e+00> : vector<8x128xf32>
    %27 = tpu.matmul %24, %26, %cst_24 {dimension_numbers = #tpu.dot_dimension_numbers<[1], [0], [0], [1], [0, 0, 1, 1], [], []>} : vector<8x128xf32>, vector<128x128xf32>, vector<8x128xf32> -> vector<8x128xf32>
    %c0_25 = arith.constant 0 : index
    %c0_26 = arith.constant 0 : index
    %c0_27 = arith.constant 0 : index
    %c0_28 = arith.constant 0 : index
    %28 = vector.load %arg9[%c0_25, %c0_26, %c0_27, %c0_28] : memref<2x2x1x128xf32, #tpu.memory_space<vmem>>, vector<1x1x1x128xf32>
    %29 = vector.shape_cast %28 : vector<1x1x1x128xf32> to vector<1x128xf32>
    %30 = vector.broadcast %29 : vector<1x128xf32> to vector<8x128xf32>
    %31 = arith.addf %27, %30 : vector<8x128xf32>
    %cst_29 = arith.constant 0.000000e+00 : f32
    %32 = vector.broadcast %cst_29 : f32 to vector<8x128xf32>
    %33 = arith.maximumf %31, %32 : vector<8x128xf32>
    %c0_30 = arith.constant 0 : index
    %c1 = arith.constant 1 : index
    %c0_31 = arith.constant 0 : index
    %c0_32 = arith.constant 0 : index
    %34 = vector.load %arg8[%c0_30, %c1, %c0_31, %c0_32] : memref<2x2x128x128xf32, #tpu.memory_space<vmem>>, vector<1x1x128x128xf32>
    %35 = vector.shape_cast %34 : vector<1x1x128x128xf32> to vector<128x128xf32>
    %cst_33 = arith.constant dense<0.000000e+00> : vector<8x128xf32>
    %36 = tpu.matmul %33, %35, %cst_33 {dimension_numbers = #tpu.dot_dimension_numbers<[1], [0], [0], [1], [0, 0, 1, 1], [], []>} : vector<8x128xf32>, vector<128x128xf32>, vector<8x128xf32> -> vector<8x128xf32>
    %c0_34 = arith.constant 0 : index
    %c1_35 = arith.constant 1 : index
    %c0_36 = arith.constant 0 : index
    %c0_37 = arith.constant 0 : index
    %37 = vector.load %arg9[%c0_34, %c1_35, %c0_36, %c0_37] : memref<2x2x1x128xf32, #tpu.memory_space<vmem>>, vector<1x1x1x128xf32>
    %38 = vector.shape_cast %37 : vector<1x1x1x128xf32> to vector<1x128xf32>
    %39 = vector.broadcast %38 : vector<1x128xf32> to vector<8x128xf32>
    %40 = arith.addf %36, %39 : vector<8x128xf32>
    %cst_38 = arith.constant 0.000000e+00 : f32
    %41 = vector.broadcast %cst_38 : f32 to vector<8x128xf32>
    %42 = arith.maximumf %40, %41 : vector<8x128xf32>
    %c0_39 = arith.constant 0 : index
    %c0_40 = arith.constant 0 : index
    %c0_41 = arith.constant 0 : index
    %43 = vector.load %arg10[%c0_39, %c0_40, %c0_41] : memref<2x1x128xf32, #tpu.memory_space<vmem>>, vector<1x1x128xf32>
    %44 = vector.shape_cast %43 : vector<1x1x128xf32> to vector<1x128xf32>
    %45 = vector.broadcast %44 : vector<1x128xf32> to vector<8x128xf32>
    %46 = arith.mulf %42, %45 : vector<8x128xf32>
    %cst_42 = arith.constant dense<0.000000e+00> : vector<8xf32>
    %47 = vector.multi_reduction <add>, %46, %cst_42 [1] : vector<8x128xf32> to vector<8xf32>
    %48 = vector.shape_cast %47 : vector<8xf32> to vector<8x1xf32>
    %c0_43 = arith.constant 0 : index
    %c0_44 = arith.constant 0 : index
    %c0_45 = arith.constant 0 : index
    %49 = vector.load %arg11[%c0_43, %c0_44, %c0_45] : memref<2x1x1xf32, #tpu.memory_space<vmem>>, vector<1x1x1xf32>
    %50 = vector.shape_cast %49 : vector<1x1x1xf32> to vector<1x1xf32>
    %51 = vector.broadcast %50 : vector<1x1xf32> to vector<8x1xf32>
    %52 = arith.addf %48, %51 : vector<8x1xf32>
    %c0_46 = arith.constant 0 : index
    %c0_47 = arith.constant 0 : index
    %53 = vector.load %arg12[%c0_46, %c0_47] : memref<8x2xf32, #tpu.memory_space<vmem>>, vector<8x1xf32>
    tpu.vector_store %arg12[%c0_46, %c0_47], %52 {strides = array<i32>} : memref<8x2xf32, #tpu.memory_space<vmem>>, vector<8x1xf32>,
    %c1_48 = arith.constant 1 : index
    %c0_49 = arith.constant 0 : index
    %c0_50 = arith.constant 0 : index
    %54 = vector.load %arg4[%c1_48, %c0_49, %c0_50] : memref<2x12x128xf32, #tpu.memory_space<vmem>>, vector<1x12x128xf32>
    %55 = vector.shape_cast %54 : vector<1x12x128xf32> to vector<12x128xf32>
    %cst_51 = arith.constant dense<0.000000e+00> : vector<8x128xf32>
    %56 = tpu.matmul %0, %55, %cst_51 {dimension_numbers = #tpu.dot_dimension_numbers<[1], [0], [0], [1], [0, 0, 1, 1], [], []>} : vector<8x12xf32>, vector<12x128xf32>, vector<8x128xf32> -> vector<8x128xf32>
    %c1_52 = arith.constant 1 : index
    %c0_53 = arith.constant 0 : index
    %c0_54 = arith.constant 0 : index
    %57 = vector.load %arg5[%c1_52, %c0_53, %c0_54] : memref<2x6x128xf32, #tpu.memory_space<vmem>>, vector<1x6x128xf32>
    %58 = vector.shape_cast %57 : vector<1x6x128xf32> to vector<6x128xf32>
    %cst_55 = arith.constant dense<0.000000e+00> : vector<8x128xf32>
    %59 = tpu.matmul %1, %58, %cst_55 {dimension_numbers = #tpu.dot_dimension_numbers<[1], [0], [0], [1], [0, 0, 1, 1], [], []>} : vector<8x6xf32>, vector<6x128xf32>, vector<8x128xf32> -> vector<8x128xf32>
    %60 = arith.addf %56, %59 : vector<8x128xf32>
    %c1_56 = arith.constant 1 : index
    %c0_57 = arith.constant 0 : index
    %c0_58 = arith.constant 0 : index
    %61 = vector.load %arg6[%c1_56, %c0_57, %c0_58] : memref<2x4x128xf32, #tpu.memory_space<vmem>>, vector<1x4x128xf32>
    %62 = vector.shape_cast %61 : vector<1x4x128xf32> to vector<4x128xf32>
    %cst_59 = arith.constant dense<0.000000e+00> : vector<8x128xf32>
    %63 = tpu.matmul %7, %62, %cst_59 {dimension_numbers = #tpu.dot_dimension_numbers<[1], [0], [0], [1], [0, 0, 1, 1], [], []>} : vector<8x4xf32>, vector<4x128xf32>, vector<8x128xf32> -> vector<8x128xf32>
    %64 = arith.addf %60, %63 : vector<8x128xf32>
    %c1_60 = arith.constant 1 : index
    %c0_61 = arith.constant 0 : index
    %c0_62 = arith.constant 0 : index
    %65 = vector.load %arg7[%c1_60, %c0_61, %c0_62] : memref<2x1x128xf32, #tpu.memory_space<vmem>>, vector<1x1x128xf32>
    %66 = vector.shape_cast %65 : vector<1x1x128xf32> to vector<1x128xf32>
    %67 = vector.broadcast %66 : vector<1x128xf32> to vector<8x128xf32>
    %68 = arith.addf %64, %67 : vector<8x128xf32>
    %cst_63 = arith.constant 0.000000e+00 : f32
    %69 = vector.broadcast %cst_63 : f32 to vector<8x128xf32>
    %70 = arith.maximumf %68, %69 : vector<8x128xf32>
    %c1_64 = arith.constant 1 : index
    %c0_65 = arith.constant 0 : index
    %c0_66 = arith.constant 0 : index
    %c0_67 = arith.constant 0 : index
    %71 = vector.load %arg8[%c1_64, %c0_65, %c0_66, %c0_67] : memref<2x2x128x128xf32, #tpu.memory_space<vmem>>, vector<1x1x128x128xf32>
    %72 = vector.shape_cast %71 : vector<1x1x128x128xf32> to vector<128x128xf32>
    %cst_68 = arith.constant dense<0.000000e+00> : vector<8x128xf32>
    %73 = tpu.matmul %70, %72, %cst_68 {dimension_numbers = #tpu.dot_dimension_numbers<[1], [0], [0], [1], [0, 0, 1, 1], [], []>} : vector<8x128xf32>, vector<128x128xf32>, vector<8x128xf32> -> vector<8x128xf32>
    %c1_69 = arith.constant 1 : index
    %c0_70 = arith.constant 0 : index
    %c0_71 = arith.constant 0 : index
    %c0_72 = arith.constant 0 : index
    %74 = vector.load %arg9[%c1_69, %c0_70, %c0_71, %c0_72] : memref<2x2x1x128xf32, #tpu.memory_space<vmem>>, vector<1x1x1x128xf32>
    %75 = vector.shape_cast %74 : vector<1x1x1x128xf32> to vector<1x128xf32>
    %76 = vector.broadcast %75 : vector<1x128xf32> to vector<8x128xf32>
    %77 = arith.addf %73, %76 : vector<8x128xf32>
    %cst_73 = arith.constant 0.000000e+00 : f32
    %78 = vector.broadcast %cst_73 : f32 to vector<8x128xf32>
    %79 = arith.maximumf %77, %78 : vector<8x128xf32>
    %c1_74 = arith.constant 1 : index
    %c1_75 = arith.constant 1 : index
    %c0_76 = arith.constant 0 : index
    %c0_77 = arith.constant 0 : index
    %80 = vector.load %arg8[%c1_74, %c1_75, %c0_76, %c0_77] : memref<2x2x128x128xf32, #tpu.memory_space<vmem>>, vector<1x1x128x128xf32>
    %81 = vector.shape_cast %80 : vector<1x1x128x128xf32> to vector<128x128xf32>
    %cst_78 = arith.constant dense<0.000000e+00> : vector<8x128xf32>
    %82 = tpu.matmul %79, %81, %cst_78 {dimension_numbers = #tpu.dot_dimension_numbers<[1], [0], [0], [1], [0, 0, 1, 1], [], []>} : vector<8x128xf32>, vector<128x128xf32>, vector<8x128xf32> -> vector<8x128xf32>
    %c1_79 = arith.constant 1 : index
    %c1_80 = arith.constant 1 : index
    %c0_81 = arith.constant 0 : index
    %c0_82 = arith.constant 0 : index
    %83 = vector.load %arg9[%c1_79, %c1_80, %c0_81, %c0_82] : memref<2x2x1x128xf32, #tpu.memory_space<vmem>>, vector<1x1x1x128xf32>
    %84 = vector.shape_cast %83 : vector<1x1x1x128xf32> to vector<1x128xf32>
    %85 = vector.broadcast %84 : vector<1x128xf32> to vector<8x128xf32>
    %86 = arith.addf %82, %85 : vector<8x128xf32>
    %cst_83 = arith.constant 0.000000e+00 : f32
    %87 = vector.broadcast %cst_83 : f32 to vector<8x128xf32>
    %88 = arith.maximumf %86, %87 : vector<8x128xf32>
    %c1_84 = arith.constant 1 : index
    %c0_85 = arith.constant 0 : index
    %c0_86 = arith.constant 0 : index
    %89 = vector.load %arg10[%c1_84, %c0_85, %c0_86] : memref<2x1x128xf32, #tpu.memory_space<vmem>>, vector<1x1x128xf32>
    %90 = vector.shape_cast %89 : vector<1x1x128xf32> to vector<1x128xf32>
    %91 = vector.broadcast %90 : vector<1x128xf32> to vector<8x128xf32>
    %92 = arith.mulf %88, %91 : vector<8x128xf32>
    %cst_87 = arith.constant dense<0.000000e+00> : vector<8xf32>
    %93 = vector.multi_reduction <add>, %92, %cst_87 [1] : vector<8x128xf32> to vector<8xf32>
    %94 = vector.shape_cast %93 : vector<8xf32> to vector<8x1xf32>
    %c1_88 = arith.constant 1 : index
    %c0_89 = arith.constant 0 : index
    %c0_90 = arith.constant 0 : index
    %95 = vector.load %arg11[%c1_88, %c0_89, %c0_90] : memref<2x1x1xf32, #tpu.memory_space<vmem>>, vector<1x1x1xf32>
    %96 = vector.shape_cast %95 : vector<1x1x1xf32> to vector<1x1xf32>
    %97 = vector.broadcast %96 : vector<1x1xf32> to vector<8x1xf32>
    %98 = arith.addf %94, %97 : vector<8x1xf32>
    %c0_91 = arith.constant 0 : index
    %c1_92 = arith.constant 1 : index
    %99 = vector.load %arg12[%c0_91, %c1_92] : memref<8x2xf32, #tpu.memory_space<vmem>>, vector<8x1xf32>
    tpu.vector_store %arg12[%c0_91, %c1_92], %98 {strides = array<i32>} : memref<8x2xf32, #tpu.memory_space<vmem>>, vector<8x1xf32>,
    return
  }
  func.func @transform_0(%arg0: i32) -> (i32, i32) {
    %c0_i32 = arith.constant 0 : i32
    %c0_i32_0 = arith.constant 0 : i32
    return %arg0, %c0_i32 : i32, i32
  }
  func.func @transform_1(%arg0: i32) -> (i32, i32) {
    %c0_i32 = arith.constant 0 : i32
    %c0_i32_0 = arith.constant 0 : i32
    return %arg0, %c0_i32 : i32, i32
  }
  func.func @transform_2(%arg0: i32) -> (i32, i32) {
    %c0_i32 = arith.constant 0 : i32
    %c0_i32_0 = arith.constant 0 : i32
    return %arg0, %c0_i32 : i32, i32
  }
  func.func @transform_3(%arg0: i32) -> (i32, i32, i32) {
    %c0_i32 = arith.constant 0 : i32
    %c0_i32_0 = arith.constant 0 : i32
    %c0_i32_1 = arith.constant 0 : i32
    %c0_i32_2 = arith.constant 0 : i32
    return %c0_i32, %c0_i32_0, %c0_i32_1 : i32, i32, i32
  }
  func.func @transform_4(%arg0: i32) -> (i32, i32, i32) {
    %c0_i32 = arith.constant 0 : i32
    %c0_i32_0 = arith.constant 0 : i32
    %c0_i32_1 = arith.constant 0 : i32
    %c0_i32_2 = arith.constant 0 : i32
    return %c0_i32, %c0_i32_0, %c0_i32_1 : i32, i32, i32
  }
  func.func @transform_5(%arg0: i32) -> (i32, i32, i32) {
    %c0_i32 = arith.constant 0 : i32
    %c0_i32_0 = arith.constant 0 : i32
    %c0_i32_1 = arith.constant 0 : i32
    %c0_i32_2 = arith.constant 0 : i32
    return %c0_i32, %c0_i32_0, %c0_i32_1 : i32, i32, i32
  }
  func.func @transform_6(%arg0: i32) -> (i32, i32, i32) {
    %c0_i32 = arith.constant 0 : i32
    %c0_i32_0 = arith.constant 0 : i32
    %c0_i32_1 = arith.constant 0 : i32
    %c0_i32_2 = arith.constant 0 : i32
    return %c0_i32, %c0_i32_0, %c0_i32_1 : i32, i32, i32
  }
  func.func @transform_7(%arg0: i32) -> (i32, i32, i32, i32) {
    %c0_i32 = arith.constant 0 : i32
    %c0_i32_0 = arith.constant 0 : i32
    %c0_i32_1 = arith.constant 0 : i32
    %c0_i32_2 = arith.constant 0 : i32
    %c0_i32_3 = arith.constant 0 : i32
    return %c0_i32, %c0_i32_0, %c0_i32_1, %c0_i32_2 : i32, i32, i32, i32
  }
  func.func @transform_8(%arg0: i32) -> (i32, i32, i32, i32) {
    %c0_i32 = arith.constant 0 : i32
    %c0_i32_0 = arith.constant 0 : i32
    %c0_i32_1 = arith.constant 0 : i32
    %c0_i32_2 = arith.constant 0 : i32
    %c0_i32_3 = arith.constant 0 : i32
    return %c0_i32, %c0_i32_0, %c0_i32_1, %c0_i32_2 : i32, i32, i32, i32
  }
  func.func @transform_9(%arg0: i32) -> (i32, i32, i32) {
    %c0_i32 = arith.constant 0 : i32
    %c0_i32_0 = arith.constant 0 : i32
    %c0_i32_1 = arith.constant 0 : i32
    %c0_i32_2 = arith.constant 0 : i32
    return %c0_i32, %c0_i32_0, %c0_i32_1 : i32, i32, i32
  }
  func.func @transform_10(%arg0: i32) -> (i32, i32, i32) {
    %c0_i32 = arith.constant 0 : i32
    %c0_i32_0 = arith.constant 0 : i32
    %c0_i32_1 = arith.constant 0 : i32
    %c0_i32_2 = arith.constant 0 : i32
    return %c0_i32, %c0_i32_0, %c0_i32_1 : i32, i32, i32
  }
  func.func @transform_11(%arg0: i32) -> (i32, i32) {
    %c0_i32 = arith.constant 0 : i32
    %c0_i32_0 = arith.constant 0 : i32
    return %arg0, %c0_i32 : i32, i32
  }
}

</mosaic_0001>

<llo_original>
// kernel: species_critic_forward.1
$region0: #{species_critic_forward.1}
  #allocation0 [shape = 'u32[]', space=smem, size = 0x4, offset = 0x4, fixed_abs, tag = 'smem constant byte address 0x4 - core index']
  #allocation1 [shape = 'u32[144,128]{1,0:T(1,128)}', space=vmem, size = 0x12000, scoped, tag = 'internal scratch']
  %s0 = inlined_call_operand.vmem [shape: f32[8,12], index: 0, kind: input, shape index: {}]
  %s1 = inlined_call_operand.vmem [shape: f32[8,6], index: 1, kind: input, shape index: {}]
  %s2 = inlined_call_operand.vmem [shape: s32[8,1], index: 2, kind: input, shape index: {}]
  %s3 = inlined_call_operand.vmem [shape: f32[2,12,128], index: 3, kind: input, shape index: {}]
  %s4 = inlined_call_operand.vmem [shape: f32[2,6,128], index: 4, kind: input, shape index: {}]
  %s5 = inlined_call_operand.vmem [shape: f32[2,4,128], index: 5, kind: input, shape index: {}]
  %s6 = inlined_call_operand.vmem [shape: f32[2,1,128], index: 6, kind: input, shape index: {}]
  %s7 = inlined_call_operand.hbm [shape: f32[2,2,128,128], index: 7, kind: input, shape index: {}]
  %s8 = inlined_call_operand.vmem [shape: f32[2,2,1,128], index: 8, kind: input, shape index: {}]
  %s9 = inlined_call_operand.vmem [shape: f32[2,1,128], index: 9, kind: input, shape index: {}]
  %s10 = inlined_call_operand.vmem [shape: f32[2,1,1], index: 10, kind: input, shape index: {}]
  %s11 = inlined_call_operand.vmem [shape: f32[8,2], index: 11, kind: output, shape index: {}]
  %s12 = sld [smem:[#allocation0]]
  $region58: #{species_critic_forward.1} parent=0
    _
  %s14 = ssub.s32 1, %s12
  %s15 = scalar_select 0, %s14, %s12
  $region1: #{species_critic_forward.1} parent=0
    #allocation2 [shape = 'u8[262144]{0}', space=vmem, size = 0x40000, scoped, tag = 'input window, operand 7, single buffered']
    #allocation3 [shape = 's32[1]{0}', space=sflag, size = 0x4, scoped, tag = 'scoped memory for species_critic_forward.1']
    %16 = vsyncpa [#allocation3], 0
    // Predicated region
    $region2: #{species_critic_forward.1} parent=1 // pred_check
      _
    $region3: #{species_critic_forward.1} parent=1 // pred_check_branch
      %18 = sbr.rel (0) target = $region5
    $region4: #{species_critic_forward.1} parent=1 // pred_region
      _
    $region5: #{species_critic_forward.1} parent=1 // pred_fallthru
      _
    // Predicated region
    $region6: #{species_critic_forward.1} parent=1 // pred_check
      _
    $region7: #{species_critic_forward.1} parent=1 // pred_check_branch
      %20 = sbr.rel (0) target = $region9
    $region8: #{species_critic_forward.1} parent=1 // pred_region
      _
    $region9: #{species_critic_forward.1} parent=1 // pred_fallthru
      _
    // Predicated region
    $region10: #{species_critic_forward.1} parent=1 // pred_check
      _
    $region11: #{species_critic_forward.1} parent=1 // pred_check_branch
      %22 = sbr.rel (0) target = $region13
    $region12: #{species_critic_forward.1} parent=1 // pred_region
      _
    $region13: #{species_critic_forward.1} parent=1 // pred_fallthru
      _
    // Predicated region
    $region14: #{species_critic_forward.1} parent=1 // pred_check
      _
    $region15: #{species_critic_forward.1} parent=1 // pred_check_branch
      %24 = sbr.rel (0) target = $region17
    $region16: #{species_critic_forward.1} parent=1 // pred_region
      _
    $region17: #{species_critic_forward.1} parent=1 // pred_fallthru
      _
    // Predicated region
    $region18: #{species_critic_forward.1} parent=1 // pred_check
      _
    $region19: #{species_critic_forward.1} parent=1 // pred_check_branch
      %26 = sbr.rel (0) target = $region21
    $region20: #{species_critic_forward.1} parent=1 // pred_region
      _
    $region21: #{species_critic_forward.1} parent=1 // pred_fallthru
      _
    // Predicated region
    $region22: #{species_critic_forward.1} parent=1 // pred_check
      _
    $region23: #{species_critic_forward.1} parent=1 // pred_check_branch
      %28 = sbr.rel (0) target = $region25
    $region24: #{species_critic_forward.1} parent=1 // pred_region
      _
    $region25: #{species_critic_forward.1} parent=1 // pred_fallthru
      _
    // Predicated region
    $region26: #{species_critic_forward.1} parent=1 // pred_check
      _
    $region27: #{species_critic_forward.1} parent=1 // pred_check_branch
      %30 = sbr.rel (0) target = $region29
    $region28: #{species_critic_forward.1} parent=1 // pred_region
      _
    $region29: #{species_critic_forward.1} parent=1 // pred_fallthru
      _
    // Predicated region
    $region30: #{species_critic_forward.1} parent=1 // pred_check
      _
    $region31: #{species_critic_forward.1} parent=1 // pred_check_branch
      %32 = sbr.rel (0) target = $region33
    $region32: #{species_critic_forward.1} parent=1 // pred_region
      %s34 = ssub.s32 8192, 8192
      %35 = vsyncadd [#allocation3], %s34
      %s36 = sshll.u32 [#allocation2], 4
      %s37 = int_to_ptr.vmem [resolvable:$true] %s36
      %42 = dma.hbm_to_vmem [thread:$0]  %s7, 8192, %s37, [#allocation3], 128, 128, 8
    $region33: #{species_critic_forward.1} parent=1 // pred_fallthru
      _
    // Predicated region
    $region34: #{species_critic_forward.1} parent=1 // pred_check
      _
    $region35: #{species_critic_forward.1} parent=1 // pred_check_branch
      %44 = sbr.rel (0) target = $region37
    $region36: #{species_critic_forward.1} parent=1 // pred_region
      _
    $region37: #{species_critic_forward.1} parent=1 // pred_fallthru
      _
    // Predicated region
    $region38: #{species_critic_forward.1} parent=1 // pred_check
      _
    $region39: #{species_critic_forward.1} parent=1 // pred_check_branch
      %46 = sbr.rel (0) target = $region41
    $region40: #{species_critic_forward.1} parent=1 // pred_region
      _
    $region41: #{species_critic_forward.1} parent=1 // pred_fallthru
      _
    // Predicated region
    $region42: #{species_critic_forward.1} parent=1 // pred_check
      _
    $region43: #{species_critic_forward.1} parent=1 // pred_check_branch
      %48 = sbr.rel (0) target = $region45
    $region44: #{species_critic_forward.1} parent=1 // pred_region
      _
    $region45: #{species_critic_forward.1} parent=1 // pred_fallthru
      _
    // Predicated region
    $region46: #{species_critic_forward.1} parent=1 // pred_check
      _
    $region47: #{species_critic_forward.1} parent=1 // pred_check_branch
      %50 = sbr.rel (0) target = $region49
    $region48: #{species_critic_forward.1} parent=1 // pred_region
      %51 = dma.done [#allocation3], 8192
    $region49: #{species_critic_forward.1} parent=1 // pred_fallthru
      _
    %v52 = vld [vmem:[%s0] sm:$0xff]
    %v53 = vld [vmem:[%s1] sm:$0xff]
    %v54 = vld [vmem:[%s2] sm:$0xff]
    %v55 = vlaneseq
    %v56 = vand.u32 %v55, 127
    %57 = vset.pattern.permute.xlu0 0
    %58 = vperm.xlu0 %57, %v54
    %v59 = vpop.permute.xlu0 %58
    %vm60 = vcmp.eq.s32.totalorder %v56, %v59
    %v61 = vsel %vm60, 1, 0
    %v62 = vcvt.s32.f32 %v61
    %v63 = vld [vmem:[%s3] sm:$0xff]
    %v64 = vld [vmem:[%s3 + $0x8] sm:$0xf]
    %v65 = vld [vmem:[%s4] sm:$0x3f]
    %vm66 = vcmask 48128
    %v68 = vsel %vm66, %v53, 0
    %vm70 = vcmask 1045504
    %v72 = vsel %vm70, %v65, 0
    %74 = vmatprep.subr.mxu0 0.0
    %75 = vmatpush1.msra.mxu0 %v72
    %76 = vmatprep.subr.mxu0 0.0
    %77 = vmatpush1.msra.mxu0 0.0
    %78 = vmatprep.subr.mxu0 0.0
    %79 = vmatpush1.msra.mxu0 0.0
    %80 = vmatprep.subr.mxu0 0.0
    %81 = vmatpush1.msra.mxu0 0.0
    %82 = vmatprep.subr.mxu0 0.0
    %83 = vmatpush1.msra.mxu0 0.0
    %84 = vmatprep.subr.mxu0 0.0
    %85 = vmatpush1.msra.mxu0 0.0
    %86 = vmatprep.subr.mxu0 0.0
    %87 = vmatpush1.msra.mxu0 0.0
    %88 = vmatprep.subr.mxu0 0.0
    %89 = vmatpush1.msra.mxu0 0.0
    %90 = vmatprep.subr.mxu0 0.0
    %91 = vmatpush1.msra.mxu0 0.0
    %92 = vmatprep.subr.mxu0 0.0
    %93 = vmatpush1.msra.mxu0 0.0
    %94 = vmatprep.subr.mxu0 0.0
    %95 = vmatpush1.msra.mxu0 0.0
    %96 = vmatprep.subr.mxu0 0.0
    %97 = vmatpush1.msra.mxu0 0.0
    %98 = vmatprep.subr.mxu0 0.0
    %99 = vmatpush1.msra.mxu0 0.0
    %100 = vmatprep.subr.mxu0 0.0
    %101 = vmatpush1.msra.mxu0 0.0
    %102 = vmatprep.subr.mxu0 0.0
    %103 = vmatpush1.msra.mxu0 0.0
    %104 = vmatprep.subr.mxu0 0.0
    %105 = vmatpush1.msra.mxu0 0.0
    %106 = vmatprep.subr.mxu0 0.0
    %107 = vmatpush1.msra.mxu0 0.0
    %108 = vmatprep.subr.mxu0 0.0
    %109 = vmatpush1.msra.mxu0 0.0
    %110 = vmatprep.subr.mxu0 0.0
    %111 = vmatpush1.msra.mxu0 0.0
    %112 = vmatprep.subr.mxu0 0.0
    %113 = vmatpush1.msra.mxu0 0.0
    %114 = vmatprep.subr.mxu0 0.0
    %115 = vmatpush1.msra.mxu0 0.0
    %116 = vmatprep.subr.mxu0 0.0
    %117 = vmatpush1.msra.mxu0 0.0
    %118 = vmatprep.subr.mxu0 0.0
    %119 = vmatpush1.msra.mxu0 0.0
    %120 = vmatprep.subr.mxu0 0.0
    %121 = vmatpush1.msra.mxu0 0.0
    %122 = vmatprep.subr.mxu0 0.0
    %123 = vmatpush1.msra.mxu0 0.0
    %124 = vmatprep.subr.mxu0 0.0
    %125 = vmatpush1.msra.mxu0 0.0
    %126 = vmatprep.subr.mxu0 0.0
    %127 = vmatpush1.msra.mxu0 0.0
    %128 = vmatprep.subr.mxu0 0.0
    %129 = vmatpush1.msra.mxu0 0.0
    %130 = vmatprep.subr.mxu0 0.0
    %131 = vmatpush1.msra.mxu0 0.0
    %132 = vmatprep.subr.mxu0 0.0
    %133 = vmatpush1.msra.mxu0 0.0
    %134 = vmatprep.subr.mxu0 0.0
    %135 = vmatpush1.msra.mxu0 0.0
    %136 = vmatprep.subr.mxu0 0.0
    %137 = vmatpush1.msra.mxu0 0.0
    %138 = vmatprep.mubr.f32.mxu0 0.0
    %139 = vmatmul.mubr.f32.gmra.mrb[0].mxu0 %v68
    %v140 = vpop.f32.mrb[0].mxu0
    %v141 = vadd.f32 0.0, %v140
    %v142 = vpop.f32.mrb[0].mxu0
    %143 = vdwg.mxu0
    %vm144 = vcmask 97280
    %v146 = vsel %vm144, %v52, 0
    %vm148 = vcmask 1043456
    %v150 = vsel %vm148, %v64, 0
    %152 = vmatprep.subr.mxu0 0.0
    %153 = vmatpush1.msra.mxu0 %v63
    %154 = vmatprep.subr.mxu0 0.0
    %155 = vmatpush1.msra.mxu0 %v150
    %156 = vmatprep.subr.mxu0 0.0
    %157 = vmatpush1.msra.mxu0 0.0
    %158 = vmatprep.subr.mxu0 0.0
    %159 = vmatpush1.msra.mxu0 0.0
    %160 = vmatprep.subr.mxu0 0.0
    %161 = vmatpush1.msra.mxu0 0.0
    %162 = vmatprep.subr.mxu0 0.0
    %163 = vmatpush1.msra.mxu0 0.0
    %164 = vmatprep.subr.mxu0 0.0
    %165 = vmatpush1.msra.mxu0 0.0
    %166 = vmatprep.subr.mxu0 0.0
    %167 = vmatpush1.msra.mxu0 0.0
    %168 = vmatprep.subr.mxu0 0.0
    %169 = vmatpush1.msra.mxu0 0.0
    %170 = vmatprep.subr.mxu0 0.0
    %171 = vmatpush1.msra.mxu0 0.0
    %172 = vmatprep.subr.mxu0 0.0
    %173 = vmatpush1.msra.mxu0 0.0
    %174 = vmatprep.subr.mxu0 0.0
    %175 = vmatpush1.msra.mxu0 0.0
    %176 = vmatprep.subr.mxu0 0.0
    %177 = vmatpush1.msra.mxu0 0.0
    %178 = vmatprep.subr.mxu0 0.0
    %179 = vmatpush1.msra.mxu0 0.0
    %180 = vmatprep.subr.mxu0 0.0
    %181 = vmatpush1.msra.mxu0 0.0
    %182 = vmatprep.subr.mxu0 0.0
    %183 = vmatpush1.msra.mxu0 0.0
    %184 = vmatprep.subr.mxu0 0.0
    %185 = vmatpush1.msra.mxu0 0.0
    %186 = vmatprep.subr.mxu0 0.0
    %187 = vmatpush1.msra.mxu0 0.0
    %188 = vmatprep.subr.mxu0 0.0
    %189 = vmatpush1.msra.mxu0 0.0
    %190 = vmatprep.subr.mxu0 0.0
    %191 = vmatpush1.msra.mxu0 0.0
    %192 = vmatprep.subr.mxu0 0.0
    %193 = vmatpush1.msra.mxu0 0.0
    %194 = vmatprep.subr.mxu0 0.0
    %195 = vmatpush1.msra.mxu0 0.0
    %196 = vmatprep.subr.mxu0 0.0
    %197 = vmatpush1.msra.mxu0 0.0
    %198 = vmatprep.subr.mxu0 0.0
    %199 = vmatpush1.msra.mxu0 0.0
    %200 = vmatprep.subr.mxu0 0.0
    %201 = vmatpush1.msra.mxu0 0.0
    %202 = vmatprep.subr.mxu0 0.0
    %203 = vmatpush1.msra.mxu0 0.0
    %204 = vmatprep.subr.mxu0 0.0
    %205 = vmatpush1.msra.mxu0 0.0
    %206 = vmatprep.subr.mxu0 0.0
    %207 = vmatpush1.msra.mxu0 0.0
    %208 = vmatprep.subr.mxu0 0.0
    %209 = vmatpush1.msra.mxu0 0.0
    %210 = vmatprep.subr.mxu0 0.0
    %211 = vmatpush1.msra.mxu0 0.0
    %212 = vmatprep.subr.mxu0 0.0
    %213 = vmatpush1.msra.mxu0 0.0
    %214 = vmatprep.subr.mxu0 0.0
    %215 = vmatpush1.msra.mxu0 0.0
    %216 = vmatprep.mubr.f32.mxu0 0.0
    %217 = vmatmul.mubr.f32.gmra.mrb[0].mxu0 %v146
    %v218 = vpop.f32.mrb[0].mxu0
    %v219 = vadd.f32 %v141, %v218
    %v220 = vpop.f32.mrb[0].mxu0
    %221 = vdwg.mxu0
    %v222 = vld [vmem:[%s5] sm:$0xf]
    %vm223 = vcmask 31744
    %v225 = vsel %vm223, %v62, 0
    %v228 = vsel %vm148, %v222, 0
    %230 = vmatprep.subr.mxu0 0.0
    %231 = vmatpush1.msra.mxu0 %v228
    %232 = vmatprep.subr.mxu0 0.0
    %233 = vmatpush1.msra.mxu0 0.0
    %234 = vmatprep.subr.mxu0 0.0
    %235 = vmatpush1.msra.mxu0 0.0
    %236 = vmatprep.subr.mxu0 0.0
    %237 = vmatpush1.msra.mxu0 0.0
    %238 = vmatprep.subr.mxu0 0.0
    %239 = vmatpush1.msra.mxu0 0.0
    %240 = vmatprep.subr.mxu0 0.0
    %241 = vmatpush1.msra.mxu0 0.0
    %242 = vmatprep.subr.mxu0 0.0
    %243 = vmatpush1.msra.mxu0 0.0
    %244 = vmatprep.subr.mxu0 0.0
    %245 = vmatpush1.msra.mxu0 0.0
    %246 = vmatprep.subr.mxu0 0.0
    %247 = vmatpush1.msra.mxu0 0.0
    %248 = vmatprep.subr.mxu0 0.0
    %249 = vmatpush1.msra.mxu0 0.0
    %250 = vmatprep.subr.mxu0 0.0
    %251 = vmatpush1.msra.mxu0 0.0
    %252 = vmatprep.subr.mxu0 0.0
    %253 = vmatpush1.msra.mxu0 0.0
    %254 = vmatprep.subr.mxu0 0.0
    %255 = vmatpush1.msra.mxu0 0.0
    %256 = vmatprep.subr.mxu0 0.0
    %257 = vmatpush1.msra.mxu0 0.0
    %258 = vmatprep.subr.mxu0 0.0
    %259 = vmatpush1.msra.mxu0 0.0
    %260 = vmatprep.subr.mxu0 0.0
    %261 = vmatpush1.msra.mxu0 0.0
    %262 = vmatprep.subr.mxu0 0.0
    %263 = vmatpush1.msra.mxu0 0.0
    %264 = vmatprep.subr.mxu0 0.0
    %265 = vmatpush1.msra.mxu0 0.0
    %266 = vmatprep.subr.mxu0 0.0
    %267 = vmatpush1.msra.mxu0 0.0
    %268 = vmatprep.subr.mxu0 0.0
    %269 = vmatpush1.msra.mxu0 0.0
    %270 = vmatprep.subr.mxu0 0.0
    %271 = vmatpush1.msra.mxu0 0.0
    %272 = vmatprep.subr.mxu0 0.0
    %273 = vmatpush1.msra.mxu0 0.0
    %274 = vmatprep.subr.mxu0 0.0
    %275 = vmatpush1.msra.mxu0 0.0
    %276 = vmatprep.subr.mxu0 0.0
    %277 = vmatpush1.msra.mxu0 0.0
    %278 = vmatprep.subr.mxu0 0.0
    %279 = vmatpush1.msra.mxu0 0.0
    %280 = vmatprep.subr.mxu0 0.0
    %281 = vmatpush1.msra.mxu0 0.0
    %282 = vmatprep.subr.mxu0 0.0
    %283 = vmatpush1.msra.mxu0 0.0
    %284 = vmatprep.subr.mxu0 0.0
    %285 = vmatpush1.msra.mxu0 0.0
    %286 = vmatprep.subr.mxu0 0.0
    %287 = vmatpush1.msra.mxu0 0.0
    %288 = vmatprep.subr.mxu0 0.0
    %289 = vmatpush1.msra.mxu0 0.0
    %290 = vmatprep.subr.mxu0 0.0
    %291 = vmatpush1.msra.mxu0 0.0
    %292 = vmatprep.subr.mxu0 0.0
    %293 = vmatpush1.msra.mxu0 0.0
    %294 = vmatprep.mubr.f32.mxu0 0.0
    %295 = vmatmul.mubr.f32.gmra.mrb[0].mxu0 %v225
    %v296 = vpop.f32.mrb[0].mxu0
    %v297 = vadd.f32 0.0, %v296
    %v298 = vpop.f32.mrb[0].mxu0
    %299 = vdwg.mxu0
    %v300 = vadd.f32 %v219, %v297
    %v301 = vld [vmem:[%s6] sm:$0x1]
    %v303 = vlaneseq
    %v304 = vshrl.u32 %v303, 7
    %v305 = vsub.s32 0, %v304
    %v306 = vrot.slane %v301, %v305
    %v308 = vadd.f32 %v300, %v306
    %v309 = vmax.f32 %v308, 0.0
    %v310 = vld [vmem:[#allocation2] sm:$0xff]
    %v311 = vld [vmem:[#allocation2 + $0x8] sm:$0xff]
    %v312 = vld [vmem:[#allocation2 + $0x10] sm:$0xff]
    %v313 = vld [vmem:[#allocation2 + $0x18] sm:$0xff]
    %v314 = vld [vmem:[#allocation2 + $0x20] sm:$0xff]
    %v315 = vld [vmem:[#allocation2 + $0x28] sm:$0xff]
    %v316 = vld [vmem:[#allocation2 + $0x30] sm:$0xff]
    %v317 = vld [vmem:[#allocation2 + $0x38] sm:$0xff]
    %v318 = vld [vmem:[#allocation2 + $0x40] sm:$0xff]
    %v319 = vld [vmem:[#allocation2 + $0x48] sm:$0xff]
    %v320 = vld [vmem:[#allocation2 + $0x50] sm:$0xff]
    %v321 = vld [vmem:[#allocation2 + $0x58] sm:$0xff]
    %v322 = vld [vmem:[#allocation2 + $0x60] sm:$0xff]
    %v323 = vld [vmem:[#allocation2 + $0x68] sm:$0xff]
    %v324 = vld [vmem:[#allocation2 + $0x70] sm:$0xff]
    %v325 = vld [vmem:[#allocation2 + $0x78] sm:$0xff]
    %v326 = vld [vmem:[%s8] sm:$0x1]
    %v328 = vlaneseq
    %v329 = vshrl.u32 %v328, 7
    %v330 = vsub.s32 0, %v329
    %v331 = vrot.slane %v326, %v330
    %333 = vmatprep.subr.mxu0 0.0
    %334 = vmatpush1.msra.mxu0 %v310
    %335 = vmatprep.subr.mxu0 0.0
    %336 = vmatpush1.msra.mxu0 %v311
    %337 = vmatprep.subr.mxu0 0.0
    %338 = vmatpush1.msra.mxu0 %v312
    %339 = vmatprep.subr.mxu0 0.0
    %340 = vmatpush1.msra.mxu0 %v313
    %341 = vmatprep.subr.mxu0 0.0
    %342 = vmatpush1.msra.mxu0 %v314
    %343 = vmatprep.subr.mxu0 0.0
    %344 = vmatpush1.msra.mxu0 %v315
    %345 = vmatprep.subr.mxu0 0.0
    %346 = vmatpush1.msra.mxu0 %v316
    %347 = vmatprep.subr.mxu0 0.0
    %348 = vmatpush1.msra.mxu0 %v317
    %349 = vmatprep.subr.mxu0 0.0
    %350 = vmatpush1.msra.mxu0 %v318
    %351 = vmatprep.subr.mxu0 0.0
    %352 = vmatpush1.msra.mxu0 %v319
    %353 = vmatprep.subr.mxu0 0.0
    %354 = vmatpush1.msra.mxu0 %v320
    %355 = vmatprep.subr.mxu0 0.0
    %356 = vmatpush1.msra.mxu0 %v321
    %357 = vmatprep.subr.mxu0 0.0
    %358 = vmatpush1.msra.mxu0 %v322
    %359 = vmatprep.subr.mxu0 0.0
    %360 = vmatpush1.msra.mxu0 %v323
    %361 = vmatprep.subr.mxu0 0.0
    %362 = vmatpush1.msra.mxu0 %v324
    %363 = vmatprep.subr.mxu0 0.0
    %364 = vmatpush1.msra.mxu0 %v325
    %365 = vmatprep.subr.mxu0 0.0
    %366 = vmatpush1.msra.mxu0 0.0
    %367 = vmatprep.subr.mxu0 0.0
    %368 = vmatpush1.msra.mxu0 0.0
    %369 = vmatprep.subr.mxu0 0.0
    %370 = vmatpush1.msra.mxu0 0.0
    %371 = vmatprep.subr.mxu0 0.0
    %372 = vmatpush1.msra.mxu0 0.0
    %373 = vmatprep.subr.mxu0 0.0
    %374 = vmatpush1.msra.mxu0 0.0
    %375 = vmatprep.subr.mxu0 0.0
    %376 = vmatpush1.msra.mxu0 0.0
    %377 = vmatprep.subr.mxu0 0.0
    %378 = vmatpush1.msra.mxu0 0.0
    %379 = vmatprep.subr.mxu0 0.0
    %380 = vmatpush1.msra.mxu0 0.0
    %381 = vmatprep.subr.mxu0 0.0
    %382 = vmatpush1.msra.mxu0 0.0
    %383 = vmatprep.subr.mxu0 0.0
    %384 = vmatpush1.msra.mxu0 0.0
    %385 = vmatprep.subr.mxu0 0.0
    %386 = vmatpush1.msra.mxu0 0.0
    %387 = vmatprep.subr.mxu0 0.0
    %388 = vmatpush1.msra.mxu0 0.0
    %389 = vmatprep.subr.mxu0 0.0
    %390 = vmatpush1.msra.mxu0 0.0
    %391 = vmatprep.subr.mxu0 0.0
    %392 = vmatpush1.msra.mxu0 0.0
    %393 = vmatprep.subr.mxu0 0.0
    %394 = vmatpush1.msra.mxu0 0.0
    %395 = vmatprep.subr.mxu0 0.0
    %396 = vmatpush1.msra.mxu0 0.0
    %397 = vmatprep.mubr.f32.mxu0 0.0
    %398 = vmatmul.mubr.f32.gmra.mrb[0].mxu0 %v309
    %v399 = vpop.f32.mrb[0].mxu0
    %v400 = vadd.f32 %v331, %v399
    %v401 = vpop.f32.mrb[0].mxu0
    %402 = vdwg.mxu0
    %v403 = vmax.f32 %v400, 0.0
    %s404 = scalar_lea.vmem [#allocation2], 128
    %v405 = vld [vmem:[%s404] sm:$0xff]
    %v406 = vld [vmem:[%s404 + $0x8] sm:$0xff]
    %v407 = vld [vmem:[%s404 + $0x10] sm:$0xff]
    %v408 = vld [vmem:[%s404 + $0x18] sm:$0xff]
    %v409 = vld [vmem:[%s404 + $0x20] sm:$0xff]
    %v410 = vld [vmem:[%s404 + $0x28] sm:$0xff]
    %v411 = vld [vmem:[%s404 + $0x30] sm:$0xff]
    %v412 = vld [vmem:[%s404 + $0x38] sm:$0xff]
    %v413 = vld [vmem:[%s404 + $0x40] sm:$0xff]
    %v414 = vld [vmem:[%s404 + $0x48] sm:$0xff]
    %v415 = vld [vmem:[%s404 + $0x50] sm:$0xff]
    %v416 = vld [vmem:[%s404 + $0x58] sm:$0xff]
    %v417 = vld [vmem:[%s404 + $0x60] sm:$0xff]
    %v418 = vld [vmem:[%s404 + $0x68] sm:$0xff]
    %v419 = vld [vmem:[%s404 + $0x70] sm:$0xff]
    %v420 = vld [vmem:[%s404 + $0x78] sm:$0xff]
    %s421 = scalar_lea.vmem %s8, 1
    %v422 = vld [vmem:[%s421] sm:$0x1]
    %v424 = vlaneseq
    %v425 = vshrl.u32 %v424, 7
    %v426 = vsub.s32 0, %v425
    %v427 = vrot.slane %v422, %v426
    %429 = vmatprep.subr.mxu0 0.0
    %430 = vmatpush1.msra.mxu0 %v405
    %431 = vmatprep.subr.mxu0 0.0
    %432 = vmatpush1.msra.mxu0 %v406
    %433 = vmatprep.subr.mxu0 0.0
    %434 = vmatpush1.msra.mxu0 %v407
    %435 = vmatprep.subr.mxu0 0.0
    %436 = vmatpush1.msra.mxu0 %v408
    %437 = vmatprep.subr.mxu0 0.0
    %438 = vmatpush1.msra.mxu0 %v409
    %439 = vmatprep.subr.mxu0 0.0
    %440 = vmatpush1.msra.mxu0 %v410
    %441 = vmatprep.subr.mxu0 0.0
    %442 = vmatpush1.msra.mxu0 %v411
    %443 = vmatprep.subr.mxu0 0.0
    %444 = vmatpush1.msra.mxu0 %v412
    %445 = vmatprep.subr.mxu0 0.0
    %446 = vmatpush1.msra.mxu0 %v413
    %447 = vmatprep.subr.mxu0 0.0
    %448 = vmatpush1.msra.mxu0 %v414
    %449 = vmatprep.subr.mxu0 0.0
    %450 = vmatpush1.msra.mxu0 %v415
    %451 = vmatprep.subr.mxu0 0.0
    %452 = vmatpush1.msra.mxu0 %v416
    %453 = vmatprep.subr.mxu0 0.0
    %454 = vmatpush1.msra.mxu0 %v417
    %455 = vmatprep.subr.mxu0 0.0
    %456 = vmatpush1.msra.mxu0 %v418
    %457 = vmatprep.subr.mxu0 0.0
    %458 = vmatpush1.msra.mxu0 %v419
    %459 = vmatprep.subr.mxu0 0.0
    %460 = vmatpush1.msra.mxu0 %v420
    %461 = vmatprep.subr.mxu0 0.0
    %462 = vmatpush1.msra.mxu0 0.0
    %463 = vmatprep.subr.mxu0 0.0
    %464 = vmatpush1.msra.mxu0 0.0
    %465 = vmatprep.subr.mxu0 0.0
    %466 = vmatpush1.msra.mxu0 0.0
    %467 = vmatprep.subr.mxu0 0.0
    %468 = vmatpush1.msra.mxu0 0.0
    %469 = vmatprep.subr.mxu0 0.0
    %470 = vmatpush1.msra.mxu0 0.0
    %471 = vmatprep.subr.mxu0 0.0
    %472 = vmatpush1.msra.mxu0 0.0
    %473 = vmatprep.subr.mxu0 0.0
    %474 = vmatpush1.msra.mxu0 0.0
    %475 = vmatprep.subr.mxu0 0.0
    %476 = vmatpush1.msra.mxu0 0.0
    %477 = vmatprep.subr.mxu0 0.0
    %478 = vmatpush1.msra.mxu0 0.0
    %479 = vmatprep.subr.mxu0 0.0
    %480 = vmatpush1.msra.mxu0 0.0
    %481 = vmatprep.subr.mxu0 0.0
    %482 = vmatpush1.msra.mxu0 0.0
    %483 = vmatprep.subr.mxu0 0.0
    %484 = vmatpush1.msra.mxu0 0.0
    %485 = vmatprep.subr.mxu0 0.0
    %486 = vmatpush1.msra.mxu0 0.0
    %487 = vmatprep.subr.mxu0 0.0
    %488 = vmatpush1.msra.mxu0 0.0
    %489 = vmatprep.subr.mxu0 0.0
    %490 = vmatpush1.msra.mxu0 0.0
    %491 = vmatprep.subr.mxu0 0.0
    %492 = vmatpush1.msra.mxu0 0.0
    %493 = vmatprep.mubr.f32.mxu0 0.0
    %494 = vmatmul.mubr.f32.gmra.mrb[0].mxu0 %v403
    %v495 = vpop.f32.mrb[0].mxu0
    %v496 = vadd.f32 %v427, %v495
    %v497 = vpop.f32.mrb[0].mxu0
    %498 = vdwg.mxu0
    %v499 = vmax.f32 %v496, 0.0
    %v500 = vld [vmem:[%s9] sm:$0x1]
    %v502 = vlaneseq
    %v503 = vshrl.u32 %v502, 7
    %v504 = vsub.s32 0, %v503
    %v505 = vrot.slane %v500, %v504
    %v507 = vmul.f32 %v499, %v505
    %508 = vadd.xlane.f32.xlu0 %v507
    %v509 = vpop.xlane.xlu0 %508
    %v510 = vld [vmem:[%s10] sm:$0x1]
    %v512 = vlaneseq
    %v513 = vshrl.u32 %v512, 7
    %v514 = vsub.s32 0, %v513
    %v515 = vrot.slane %v510, %v514
    %v517 = vadd.f32 %v509, %v515
    %vm518 = vcmask 7168
    %519 = vst.msk [vmem:[%s11] sm:$0xff] %vm518, %v517
    %s520 = scalar_lea.vmem %s3, 16
    %v521 = vld [vmem:[%s520] sm:$0xff]
    %v522 = vld [vmem:[%s520 + $0x8] sm:$0xf]
    %s523 = scalar_lea.vmem %s4, 8
    %v524 = vld [vmem:[%s523] sm:$0x3f]
    %v526 = vsel %vm70, %v524, 0
    %528 = vmatprep.subr.mxu0 0.0
    %529 = vmatpush1.msra.mxu0 %v526
    %530 = vmatprep.subr.mxu0 0.0
    %531 = vmatpush1.msra.mxu0 0.0
    %532 = vmatprep.subr.mxu0 0.0
    %533 = vmatpush1.msra.mxu0 0.0
    %534 = vmatprep.subr.mxu0 0.0
    %535 = vmatpush1.msra.mxu0 0.0
    %536 = vmatprep.subr.mxu0 0.0
    %537 = vmatpush1.msra.mxu0 0.0
    %538 = vmatprep.subr.mxu0 0.0
    %539 = vmatpush1.msra.mxu0 0.0
    %540 = vmatprep.subr.mxu0 0.0
    %541 = vmatpush1.msra.mxu0 0.0
    %542 = vmatprep.subr.mxu0 0.0
    %543 = vmatpush1.msra.mxu0 0.0
    %544 = vmatprep.subr.mxu0 0.0
    %545 = vmatpush1.msra.mxu0 0.0
    %546 = vmatprep.subr.mxu0 0.0
    %547 = vmatpush1.msra.mxu0 0.0
    %548 = vmatprep.subr.mxu0 0.0
    %549 = vmatpush1.msra.mxu0 0.0
    %550 = vmatprep.subr.mxu0 0.0
    %551 = vmatpush1.msra.mxu0 0.0
    %552 = vmatprep.subr.mxu0 0.0
    %553 = vmatpush1.msra.mxu0 0.0
    %554 = vmatprep.subr.mxu0 0.0
    %555 = vmatpush1.msra.mxu0 0.0
    %556 = vmatprep.subr.mxu0 0.0
    %557 = vmatpush1.msra.mxu0 0.0
    %558 = vmatprep.subr.mxu0 0.0
    %559 = vmatpush1.msra.mxu0 0.0
    %560 = vmatprep.subr.mxu0 0.0
    %561 = vmatpush1.msra.mxu0 0.0
    %562 = vmatprep.subr.mxu0 0.0
    %563 = vmatpush1.msra.mxu0 0.0
    %564 = vmatprep.subr.mxu0 0.0
    %565 = vmatpush1.msra.mxu0 0.0
    %566 = vmatprep.subr.mxu0 0.0
    %567 = vmatpush1.msra.mxu0 0.0
    %568 = vmatprep.subr.mxu0 0.0
    %569 = vmatpush1.msra.mxu0 0.0
    %570 = vmatprep.subr.mxu0 0.0
    %571 = vmatpush1.msra.mxu0 0.0
    %572 = vmatprep.subr.mxu0 0.0
    %573 = vmatpush1.msra.mxu0 0.0
    %574 = vmatprep.subr.mxu0 0.0
    %575 = vmatpush1.msra.mxu0 0.0
    %576 = vmatprep.subr.mxu0 0.0
    %577 = vmatpush1.msra.mxu0 0.0
    %578 = vmatprep.subr.mxu0 0.0
    %579 = vmatpush1.msra.mxu0 0.0
    %580 = vmatprep.subr.mxu0 0.0
    %581 = vmatpush1.msra.mxu0 0.0
    %582 = vmatprep.subr.mxu0 0.0
    %583 = vmatpush1.msra.mxu0 0.0
    %584 = vmatprep.subr.mxu0 0.0
    %585 = vmatpush1.msra.mxu0 0.0
    %586 = vmatprep.subr.mxu0 0.0
    %587 = vmatpush1.msra.mxu0 0.0
    %588 = vmatprep.subr.mxu0 0.0
    %589 = vmatpush1.msra.mxu0 0.0
    %590 = vmatprep.subr.mxu0 0.0
    %591 = vmatpush1.msra.mxu0 0.0
    %592 = vmatprep.mubr.f32.mxu0 0.0
    %593 = vmatmul.mubr.f32.gmra.mrb[0].mxu0 %v68
    %v594 = vpop.f32.mrb[0].mxu0
    %v595 = vadd.f32 0.0, %v594
    %v596 = vpop.f32.mrb[0].mxu0
    %597 = vdwg.mxu0
    %v599 = vsel %vm148, %v522, 0
    %601 = vmatprep.subr.mxu0 0.0
    %602 = vmatpush1.msra.mxu0 %v521
    %603 = vmatprep.subr.mxu0 0.0
    %604 = vmatpush1.msra.mxu0 %v599
    %605 = vmatprep.subr.mxu0 0.0
    %606 = vmatpush1.msra.mxu0 0.0
    %607 = vmatprep.subr.mxu0 0.0
    %608 = vmatpush1.msra.mxu0 0.0
    %609 = vmatprep.subr.mxu0 0.0
    %610 = vmatpush1.msra.mxu0 0.0
    %611 = vmatprep.subr.mxu0 0.0
    %612 = vmatpush1.msra.mxu0 0.0
    %613 = vmatprep.subr.mxu0 0.0
    %614 = vmatpush1.msra.mxu0 0.0
    %615 = vmatprep.subr.mxu0 0.0
    %616 = vmatpush1.msra.mxu0 0.0
    %617 = vmatprep.subr.mxu0 0.0
    %618 = vmatpush1.msra.mxu0 0.0
    %619 = vmatprep.subr.mxu0 0.0
    %620 = vmatpush1.msra.mxu0 0.0
    %621 = vmatprep.subr.mxu0 0.0
    %622 = vmatpush1.msra.mxu0 0.0
    %623 = vmatprep.subr.mxu0 0.0
    %624 = vmatpush1.msra.mxu0 0.0
    %625 = vmatprep.subr.mxu0 0.0
    %626 = vmatpush1.msra.mxu0 0.0
    %627 = vmatprep.subr.mxu0 0.0
    %628 = vmatpush1.msra.mxu0 0.0
    %629 = vmatprep.subr.mxu0 0.0
    %630 = vmatpush1.msra.mxu0 0.0
    %631 = vmatprep.subr.mxu0 0.0
    %632 = vmatpush1.msra.mxu0 0.0
    %633 = vmatprep.subr.mxu0 0.0
    %634 = vmatpush1.msra.mxu0 0.0
    %635 = vmatprep.subr.mxu0 0.0
    %636 = vmatpush1.msra.mxu0 0.0
    %637 = vmatprep.subr.mxu0 0.0
    %638 = vmatpush1.msra.mxu0 0.0
    %639 = vmatprep.subr.mxu0 0.0
    %640 = vmatpush1.msra.mxu0 0.0
    %641 = vmatprep.subr.mxu0 0.0
    %642 = vmatpush1.msra.mxu0 0.0
    %643 = vmatprep.subr.mxu0 0.0
    %644 = vmatpush1.msra.mxu0 0.0
    %645 = vmatprep.subr.mxu0 0.0
    %646 = vmatpush1.msra.mxu0 0.0
    %647 = vmatprep.subr.mxu0 0.0
    %648 = vmatpush1.msra.mxu0 0.0
    %649 = vmatprep.subr.mxu0 0.0
    %650 = vmatpush1.msra.mxu0 0.0
    %651 = vmatprep.subr.mxu0 0.0
    %652 = vmatpush1.msra.mxu0 0.0
    %653 = vmatprep.subr.mxu0 0.0
    %654 = vmatpush1.msra.mxu0 0.0
    %655 = vmatprep.subr.mxu0 0.0
    %656 = vmatpush1.msra.mxu0 0.0
    %657 = vmatprep.subr.mxu0 0.0
    %658 = vmatpush1.msra.mxu0 0.0
    %659 = vmatprep.subr.mxu0 0.0
    %660 = vmatpush1.msra.mxu0 0.0
    %661 = vmatprep.subr.mxu0 0.0
    %662 = vmatpush1.msra.mxu0 0.0
    %663 = vmatprep.subr.mxu0 0.0
    %664 = vmatpush1.msra.mxu0 0.0
    %665 = vmatprep.mubr.f32.mxu0 0.0
    %666 = vmatmul.mubr.f32.gmra.mrb[0].mxu0 %v146
    %v667 = vpop.f32.mrb[0].mxu0
    %v668 = vadd.f32 %v595, %v667
    %v669 = vpop.f32.mrb[0].mxu0
    %670 = vdwg.mxu0
    %s671 = scalar_lea.vmem %s5, 4
    %v672 = vld [vmem:[%s671] sm:$0xf]
    %v674 = vsel %vm148, %v672, 0
    %676 = vmatprep.subr.mxu0 0.0
    %677 = vmatpush1.msra.mxu0 %v674
    %678 = vmatprep.subr.mxu0 0.0
    %679 = vmatpush1.msra.mxu0 0.0
    %680 = vmatprep.subr.mxu0 0.0
    %681 = vmatpush1.msra.mxu0 0.0
    %682 = vmatprep.subr.mxu0 0.0
    %683 = vmatpush1.msra.mxu0 0.0
    %684 = vmatprep.subr.mxu0 0.0
    %685 = vmatpush1.msra.mxu0 0.0
    %686 = vmatprep.subr.mxu0 0.0
    %687 = vmatpush1.msra.mxu0 0.0
    %688 = vmatprep.subr.mxu0 0.0
    %689 = vmatpush1.msra.mxu0 0.0
    %690 = vmatprep.subr.mxu0 0.0
    %691 = vmatpush1.msra.mxu0 0.0
    %692 = vmatprep.subr.mxu0 0.0
    %693 = vmatpush1.msra.mxu0 0.0
    %694 = vmatprep.subr.mxu0 0.0
    %695 = vmatpush1.msra.mxu0 0.0
    %696 = vmatprep.subr.mxu0 0.0
    %697 = vmatpush1.msra.mxu0 0.0
    %698 = vmatprep.subr.mxu0 0.0
    %699 = vmatpush1.msra.mxu0 0.0
    %700 = vmatprep.subr.mxu0 0.0
    %701 = vmatpush1.msra.mxu0 0.0
    %702 = vmatprep.subr.mxu0 0.0
    %703 = vmatpush1.msra.mxu0 0.0
    %704 = vmatprep.subr.mxu0 0.0
    %705 = vmatpush1.msra.mxu0 0.0
    %706 = vmatprep.subr.mxu0 0.0
    %707 = vmatpush1.msra.mxu0 0.0
    %708 = vmatprep.subr.mxu0 0.0
    %709 = vmatpush1.msra.mxu0 0.0
    %710 = vmatprep.subr.mxu0 0.0
    %711 = vmatpush1.msra.mxu0 0.0
    %712 = vmatprep.subr.mxu0 0.0
    %713 = vmatpush1.msra.mxu0 0.0
    %714 = vmatprep.subr.mxu0 0.0
    %715 = vmatpush1.msra.mxu0 0.0
    %716 = vmatprep.subr.mxu0 0.0
    %717 = vmatpush1.msra.mxu0 0.0
    %718 = vmatprep.subr.mxu0 0.0
    %719 = vmatpush1.msra.mxu0 0.0
    %720 = vmatprep.subr.mxu0 0.0
    %721 = vmatpush1.msra.mxu0 0.0
    %722 = vmatprep.subr.mxu0 0.0
    %723 = vmatpush1.msra.mxu0 0.0
    %724 = vmatprep.subr.mxu0 0.0
    %725 = vmatpush1.msra.mxu0 0.0
    %726 = vmatprep.subr.mxu0 0.0
    %727 = vmatpush1.msra.mxu0 0.0
    %728 = vmatprep.subr.mxu0 0.0
    %729 = vmatpush1.msra.mxu0 0.0
    %730 = vmatprep.subr.mxu0 0.0
    %731 = vmatpush1.msra.mxu0 0.0
    %732 = vmatprep.subr.mxu0 0.0
    %733 = vmatpush1.msra.mxu0 0.0
    %734 = vmatprep.subr.mxu0 0.0
    %735 = vmatpush1.msra.mxu0 0.0
    %736 = vmatprep.subr.mxu0 0.0
    %737 = vmatpush1.msra.mxu0 0.0
    %738 = vmatprep.subr.mxu0 0.0
    %739 = vmatpush1.msra.mxu0 0.0
    %740 = vmatprep.mubr.f32.mxu0 0.0
    %741 = vmatmul.mubr.f32.gmra.mrb[0].mxu0 %v225
    %v742 = vpop.f32.mrb[0].mxu0
    %v743 = vadd.f32 0.0, %v742
    %v744 = vpop.f32.mrb[0].mxu0
    %745 = vdwg.mxu0
    %v746 = vadd.f32 %v668, %v743
    %s747 = scalar_lea.vmem %s6, 1
    %v748 = vld [vmem:[%s747] sm:$0x1]
    %v750 = vlaneseq
    %v751 = vshrl.u32 %v750, 7
    %v752 = vsub.s32 0, %v751
    %v753 = vrot.slane %v748, %v752
    %v755 = vadd.f32 %v746, %v753
    %v756 = vmax.f32 %v755, 0.0
    %s757 = scalar_lea.vmem [#allocation2], 256
    %v758 = vld [vmem:[%s757] sm:$0xff]
    %v759 = vld [vmem:[%s757 + $0x8] sm:$0xff]
    %v760 = vld [vmem:[%s757 + $0x10] sm:$0xff]
    %v761 = vld [vmem:[%s757 + $0x18] sm:$0xff]
    %v762 = vld [vmem:[%s757 + $0x20] sm:$0xff]
    %v763 = vld [vmem:[%s757 + $0x28] sm:$0xff]
    %v764 = vld [vmem:[%s757 + $0x30] sm:$0xff]
    %v765 = vld [vmem:[%s757 + $0x38] sm:$0xff]
    %v766 = vld [vmem:[%s757 + $0x40] sm:$0xff]
    %v767 = vld [vmem:[%s757 + $0x48] sm:$0xff]
    %v768 = vld [vmem:[%s757 + $0x50] sm:$0xff]
    %v769 = vld [vmem:[%s757 + $0x58] sm:$0xff]
    %v770 = vld [vmem:[%s757 + $0x60] sm:$0xff]
    %v771 = vld [vmem:[%s757 + $0x68] sm:$0xff]
    %v772 = vld [vmem:[%s757 + $0x70] sm:$0xff]
    %v773 = vld [vmem:[%s757 + $0x78] sm:$0xff]
    %s774 = scalar_lea.vmem %s8, 2
    %v775 = vld [vmem:[%s774] sm:$0x1]
    %v777 = vlaneseq
    %v778 = vshrl.u32 %v777, 7
    %v779 = vsub.s32 0, %v778
    %v780 = vrot.slane %v775, %v779
    %782 = vmatprep.subr.mxu0 0.0
    %783 = vmatpush1.msra.mxu0 %v758
    %784 = vmatprep.subr.mxu0 0.0
    %785 = vmatpush1.msra.mxu0 %v759
    %786 = vmatprep.subr.mxu0 0.0
    %787 = vmatpush1.msra.mxu0 %v760
    %788 = vmatprep.subr.mxu0 0.0
    %789 = vmatpush1.msra.mxu0 %v761
    %790 = vmatprep.subr.mxu0 0.0
    %791 = vmatpush1.msra.mxu0 %v762
    %792 = vmatprep.subr.mxu0 0.0
    %793 = vmatpush1.msra.mxu0 %v763
    %794 = vmatprep.subr.mxu0 0.0
    %795 = vmatpush1.msra.mxu0 %v764
    %796 = vmatprep.subr.mxu0 0.0
    %797 = vmatpush1.msra.mxu0 %v765
    %798 = vmatprep.subr.mxu0 0.0
    %799 = vmatpush1.msra.mxu0 %v766
    %800 = vmatprep.subr.mxu0 0.0
    %801 = vmatpush1.msra.mxu0 %v767
    %802 = vmatprep.subr.mxu0 0.0
    %803 = vmatpush1.msra.mxu0 %v768
    %804 = vmatprep.subr.mxu0 0.0
    %805 = vmatpush1.msra.mxu0 %v769
    %806 = vmatprep.subr.mxu0 0.0
    %807 = vmatpush1.msra.mxu0 %v770
    %808 = vmatprep.subr.mxu0 0.0
    %809 = vmatpush1.msra.mxu0 %v771
    %810 = vmatprep.subr.mxu0 0.0
    %811 = vmatpush1.msra.mxu0 %v772
    %812 = vmatprep.subr.mxu0 0.0
    %813 = vmatpush1.msra.mxu0 %v773
    %814 = vmatprep.subr.mxu0 0.0
    %815 = vmatpush1.msra.mxu0 0.0
    %816 = vmatprep.subr.mxu0 0.0
    %817 = vmatpush1.msra.mxu0 0.0
    %818 = vmatprep.subr.mxu0 0.0
    %819 = vmatpush1.msra.mxu0 0.0
    %820 = vmatprep.subr.mxu0 0.0
    %821 = vmatpush1.msra.mxu0 0.0
    %822 = vmatprep.subr.mxu0 0.0
    %823 = vmatpush1.msra.mxu0 0.0
    %824 = vmatprep.subr.mxu0 0.0
    %825 = vmatpush1.msra.mxu0 0.0
    %826 = vmatprep.subr.mxu0 0.0
    %827 = vmatpush1.msra.mxu0 0.0
    %828 = vmatprep.subr.mxu0 0.0
    %829 = vmatpush1.msra.mxu0 0.0
    %830 = vmatprep.subr.mxu0 0.0
    %831 = vmatpush1.msra.mxu0 0.0
    %832 = vmatprep.subr.mxu0 0.0
    %833 = vmatpush1.msra.mxu0 0.0
    %834 = vmatprep.subr.mxu0 0.0
    %835 = vmatpush1.msra.mxu0 0.0
    %836 = vmatprep.subr.mxu0 0.0
    %837 = vmatpush1.msra.mxu0 0.0
    %838 = vmatprep.subr.mxu0 0.0
    %839 = vmatpush1.msra.mxu0 0.0
    %840 = vmatprep.subr.mxu0 0.0
    %841 = vmatpush1.msra.mxu0 0.0
    %842 = vmatprep.subr.mxu0 0.0
    %843 = vmatpush1.msra.mxu0 0.0
    %844 = vmatprep.subr.mxu0 0.0
    %845 = vmatpush1.msra.mxu0 0.0
    %846 = vmatprep.mubr.f32.mxu0 0.0
    %847 = vmatmul.mubr.f32.gmra.mrb[0].mxu0 %v756
    %v848 = vpop.f32.mrb[0].mxu0
    %v849 = vadd.f32 %v780, %v848
    %v850 = vpop.f32.mrb[0].mxu0
    %851 = vdwg.mxu0
    %v852 = vmax.f32 %v849, 0.0
    %s853 = scalar_lea.vmem [#allocation2], 384
    %v854 = vld [vmem:[%s853] sm:$0xff]
    %v855 = vld [vmem:[%s853 + $0x8] sm:$0xff]
    %v856 = vld [vmem:[%s853 + $0x10] sm:$0xff]
    %v857 = vld [vmem:[%s853 + $0x18] sm:$0xff]
    %v858 = vld [vmem:[%s853 + $0x20] sm:$0xff]
    %v859 = vld [vmem:[%s853 + $0x28] sm:$0xff]
    %v860 = vld [vmem:[%s853 + $0x30] sm:$0xff]
    %v861 = vld [vmem:[%s853 + $0x38] sm:$0xff]
    %v862 = vld [vmem:[%s853 + $0x40] sm:$0xff]
    %v863 = vld [vmem:[%s853 + $0x48] sm:$0xff]
    %v864 = vld [vmem:[%s853 + $0x50] sm:$0xff]
    %v865 = vld [vmem:[%s853 + $0x58] sm:$0xff]
    %v866 = vld [vmem:[%s853 + $0x60] sm:$0xff]
    %v867 = vld [vmem:[%s853 + $0x68] sm:$0xff]
    %v868 = vld [vmem:[%s853 + $0x70] sm:$0xff]
    %v869 = vld [vmem:[%s853 + $0x78] sm:$0xff]
    %s870 = scalar_lea.vmem %s8, 3
    %v871 = vld [vmem:[%s870] sm:$0x1]
    %v873 = vlaneseq
    %v874 = vshrl.u32 %v873, 7
    %v875 = vsub.s32 0, %v874
    %v876 = vrot.slane %v871, %v875
    %878 = vmatprep.subr.mxu0 0.0
    %879 = vmatpush1.msra.mxu0 %v854
    %880 = vmatprep.subr.mxu0 0.0
    %881 = vmatpush1.msra.mxu0 %v855
    %882 = vmatprep.subr.mxu0 0.0
    %883 = vmatpush1.msra.mxu0 %v856
    %884 = vmatprep.subr.mxu0 0.0
    %885 = vmatpush1.msra.mxu0 %v857
    %886 = vmatprep.subr.mxu0 0.0
    %887 = vmatpush1.msra.mxu0 %v858
    %888 = vmatprep.subr.mxu0 0.0
    %889 = vmatpush1.msra.mxu0 %v859
    %890 = vmatprep.subr.mxu0 0.0
    %891 = vmatpush1.msra.mxu0 %v860
    %892 = vmatprep.subr.mxu0 0.0
    %893 = vmatpush1.msra.mxu0 %v861
    %894 = vmatprep.subr.mxu0 0.0
    %895 = vmatpush1.msra.mxu0 %v862
    %896 = vmatprep.subr.mxu0 0.0
    %897 = vmatpush1.msra.mxu0 %v863
    %898 = vmatprep.subr.mxu0 0.0
    %899 = vmatpush1.msra.mxu0 %v864
    %900 = vmatprep.subr.mxu0 0.0
    %901 = vmatpush1.msra.mxu0 %v865
    %902 = vmatprep.subr.mxu0 0.0
    %903 = vmatpush1.msra.mxu0 %v866
    %904 = vmatprep.subr.mxu0 0.0
    %905 = vmatpush1.msra.mxu0 %v867
    %906 = vmatprep.subr.mxu0 0.0
    %907 = vmatpush1.msra.mxu0 %v868
    %908 = vmatprep.subr.mxu0 0.0
    %909 = vmatpush1.msra.mxu0 %v869
    %910 = vmatprep.subr.mxu0 0.0
    %911 = vmatpush1.msra.mxu0 0.0
    %912 = vmatprep.subr.mxu0 0.0
    %913 = vmatpush1.msra.mxu0 0.0
    %914 = vmatprep.subr.mxu0 0.0
    %915 = vmatpush1.msra.mxu0 0.0
    %916 = vmatprep.subr.mxu0 0.0
    %917 = vmatpush1.msra.mxu0 0.0
    %918 = vmatprep.subr.mxu0 0.0
    %919 = vmatpush1.msra.mxu0 0.0
    %920 = vmatprep.subr.mxu0 0.0
    %921 = vmatpush1.msra.mxu0 0.0
    %922 = vmatprep.subr.mxu0 0.0
    %923 = vmatpush1.msra.mxu0 0.0
    %924 = vmatprep.subr.mxu0 0.0
    %925 = vmatpush1.msra.mxu0 0.0
    %926 = vmatprep.subr.mxu0 0.0
    %927 = vmatpush1.msra.mxu0 0.0
    %928 = vmatprep.subr.mxu0 0.0
    %929 = vmatpush1.msra.mxu0 0.0
    %930 = vmatprep.subr.mxu0 0.0
    %931 = vmatpush1.msra.mxu0 0.0
    %932 = vmatprep.subr.mxu0 0.0
    %933 = vmatpush1.msra.mxu0 0.0
    %934 = vmatprep.subr.mxu0 0.0
    %935 = vmatpush1.msra.mxu0 0.0
    %936 = vmatprep.subr.mxu0 0.0
    %937 = vmatpush1.msra.mxu0 0.0
    %938 = vmatprep.subr.mxu0 0.0
    %939 = vmatpush1.msra.mxu0 0.0
    %940 = vmatprep.subr.mxu0 0.0
    %941 = vmatpush1.msra.mxu0 0.0
    %942 = vmatprep.mubr.f32.mxu0 0.0
    %943 = vmatmul.mubr.f32.gmra.mrb[0].mxu0 %v852
    %v944 = vpop.f32.mrb[0].mxu0
    %v945 = vadd.f32 %v876, %v944
    %v946 = vpop.f32.mrb[0].mxu0
    %947 = vdwg.mxu0
    %v948 = vmax.f32 %v945, 0.0
    %s949 = scalar_lea.vmem %s9, 1
    %v950 = vld [vmem:[%s949] sm:$0x1]
    %v952 = vlaneseq
    %v953 = vshrl.u32 %v952, 7
    %v954 = vsub.s32 0, %v953
    %v955 = vrot.slane %v950, %v954
    %v957 = vmul.f32 %v948, %v955
    %958 = vadd.xlane.f32.xlu0 %v957
    %v959 = vpop.xlane.xlu0 %958
    %s960 = scalar_lea.vmem %s10, 1
    %v961 = vld [vmem:[%s960] sm:$0x1]
    %v963 = vlaneseq
    %v964 = vshrl.u32 %v963, 7
    %v965 = vsub.s32 0, %v964
    %v966 = vrot.slane %v961, %v965
    %v968 = vadd.f32 %v959, %v966
    %970 = vrot.lane.b32.xlu0 %v968, 1
    %v971 = vpop.permute.xlu0 %970
    %vm973 = vcmask 15368
    %974 = vst.msk [vmem:[%s11] sm:$0xff] %vm973, %v971
    // Predicated region
    $region50: #{species_critic_forward.1} parent=1 // pred_check
      _
    $region51: #{species_critic_forward.1} parent=1 // pred_check_branch
      %976 = sbr.rel (0) target = $region53
    $region52: #{species_critic_forward.1} parent=1 // pred_region
      _
    $region53: #{species_critic_forward.1} parent=1 // pred_fallthru
      _
    // Predicated region
    $region54: #{species_critic_forward.1} parent=1 // pred_check
      _
    $region55: #{species_critic_forward.1} parent=1 // pred_check_branch
      %978 = sbr.rel (0) target = $region57
    $region56: #{species_critic_forward.1} parent=1 // pred_region
      _
    $region57: #{species_critic_forward.1} parent=1 // pred_fallthru
      _
    %979 = vsyncpa [#allocation3], 1

</llo_original>
